<compile_context>
chip_gen: v6e
topology: v6e:2x2x1
jax: 0.10.0
libtpu: 0.0.40
codegen_flags: <defaults>
</compile_context>

<pallas_src>
import functools
import math

import jax
import jax.numpy as jnp
from jax.experimental import pallas as pl
from jax.experimental.pallas import tpu as pltpu

_HALF_LOG_2PI = 0.5 * math.log(2.0 * math.pi)
_LOG_2 = math.log(2.0)


def _round_up(x, m):
    return ((x + m - 1) // m) * m


def _actor_kernel(act_limit, A, H1, H2, off1, off2, off3,
                  state_t_ref, eps_t_ref,
                  w1t_ref, w2t_ref, wht_ref, bcol_ref,
                  out_ref):
    """Fused Actor forward on a transposed (feature-major) batch tile.

    Batch lives on the lane axis, features on sublanes:
      out_ref[:A, :]   = action = act_limit * tanh(u)        shape [A, bb]
      out_ref[A:2A, :] = log_pi (elementwise, as in the PyTorch module)
    Both stores are lane-dense (bb is a multiple of 128 -> unmasked vst).
    """
    x_t = state_t_ref[...]                                        # [S, bb]

    # ---- MLP trunk (transposed): y^T = W^T @ x^T ; ReLU on VPU ----
    h = jnp.dot(w1t_ref[...], x_t, preferred_element_type=jnp.float32)
    h = jnp.maximum(h + bcol_ref[off1:off1 + H1, :], 0.0)         # [H1, bb]
    h = jnp.dot(w2t_ref[...], h, preferred_element_type=jnp.float32)
    h = jnp.maximum(h + bcol_ref[off2:off2 + H2, :], 0.0)         # [H2, bb]

    # ---- fused heads: one matmul produces [mu^T ; log_std_raw^T] ----
    head = jnp.dot(wht_ref[...], h, preferred_element_type=jnp.float32)
    head = head + bcol_ref[off3:off3 + 2 * A, :]                  # [2A, bb]
    mu = head[:A, :]
    log_std = jnp.clip(head[A:, :], 1e-6, 1.0)                    # as in the module
    std = jnp.exp(log_std)

    # ---- reparameterized sample; everything on [A, bb] (batch on lanes) ----
    eps = eps_t_ref[...]                                          # [A, bb]
    u = mu + std * eps

    # Normal(mu, std).log_prob(u) with u = mu + std*eps (elementwise):
    #   -0.5*eps^2 - log_std - 0.5*log(2*pi)
    log_mu = -0.5 * eps * eps - log_std - _HALF_LOG_2PI

    # tanh-squash correction, sharing a single EUP exp:
    #   e = exp(-2|u|)                        (never overflows)
    #   softplus(-2u) = relu(-2u) + log1p(e)
    #   tanh(u)       = sign(u) * (1 - e) / (1 + e)   (exact; no approx recip)
    e = jnp.exp(-2.0 * jnp.abs(u))
    softplus_neg2u = jnp.maximum(-2.0 * u, 0.0) + jnp.log1p(e)
    log_pi = log_mu - 2.0 * (_LOG_2 - u - softplus_neg2u)

    sign_u = jnp.where(u >= 0.0, 1.0, -1.0)
    tanh_u = sign_u * (1.0 - e) / (1.0 + e)
    action = act_limit * tanh_u

    # two direct lane-dense sub-stores (no in-kernel concatenate)
    out_ref[0:A, :] = action.astype(out_ref.dtype)
    out_ref[A:2 * A, :] = log_pi.astype(out_ref.dtype)


def pack_actor_params(params):
    """One-time parameter packing (hoisted out of the per-call hot path).

    Fuses the two heads into one [2A, H2] matmul, pre-transposes all weights
    for the feature-major kernel layout, and packs all four biases into a
    single (128, 1) column slab (one DMA descriptor).
    """
    w1 = jnp.asarray(params["w1"], jnp.float32)   # [S, H1]
    w2 = jnp.asarray(params["w2"], jnp.float32)   # [H1, H2]
    wm = jnp.asarray(params["wm"], jnp.float32)   # [H2, A]
    ws = jnp.asarray(params["ws"], jnp.float32)   # [H2, A]
    H1 = w1.shape[1]
    H2 = w2.shape[1]
    A = wm.shape[1]

    off1 = 0
    off2 = _round_up(H1, 8)
    off3 = off2 + _round_up(H2, 8)
    assert off3 + _round_up(2 * A, 8) <= 128, "packed bias column needs <=128 sublanes"

    bcol = jnp.zeros((128, 1), jnp.float32)
    bcol = bcol.at[off1:off1 + H1, 0].set(jnp.asarray(params["b1"], jnp.float32).reshape(-1))
    bcol = bcol.at[off2:off2 + H2, 0].set(jnp.asarray(params["b2"], jnp.float32).reshape(-1))
    bcol = bcol.at[off3:off3 + A, 0].set(jnp.asarray(params["bm"], jnp.float32).reshape(-1))
    bcol = bcol.at[off3 + A:off3 + 2 * A, 0].set(jnp.asarray(params["bs"], jnp.float32).reshape(-1))

    return dict(
        w1t=w1.T,                                    # [H1, S]
        w2t=w2.T,                                    # [H2, H1]
        wht=jnp.concatenate([wm, ws], axis=1).T,     # [2A, H2]
        bcol=bcol,                                   # [128, 1]
    )


def actor_forward(state, eps, packed, act_limit, block_b=1024):
    """Fused Actor forward.

    state:  [B, num_states]  float32
    eps:    [B, num_actions] float32 standard-normal noise (rsample noise)
    packed: output of pack_actor_params (built ONCE, not per call)
    returns (action, log_pi), each [B, num_actions] float32.
    """
    state = jnp.asarray(state, jnp.float32)
    eps = jnp.asarray(eps, jnp.float32)

    B, S = state.shape
    A = eps.shape[1]
    w1t, w2t, wht, bcol = packed["w1t"], packed["w2t"], packed["wht"], packed["bcol"]
    H1, H2 = w1t.shape[0], w2t.shape[0]
    assert w1t.shape[1] == S and wht.shape[0] == 2 * A and wht.shape[1] == H2
    off1 = 0
    off2 = _round_up(H1, 8)
    off3 = off2 + _round_up(H2, 8)

    # Batch on the lane axis: pad to a multiple of 128 lanes.  Single grid step
    # for B <= block_b (amortizes the ~600-cycle per-step overhead); otherwise
    # block_b-wide tiles (block_b forced to a multiple of 128).
    block_b = max(128, _round_up(block_b, 128))
    Bp = _round_up(B, 128)
    if Bp <= block_b:
        bb = Bp
    else:
        bb = block_b
        Bp = _round_up(B, bb)

    # Layout plumbing (tiny): present batch on the lane axis to the kernel.
    state_t = state.T                               # [S, B]
    eps_t = eps.T                                   # [A, B]
    if Bp != B:
        state_t = jnp.pad(state_t, ((0, 0), (0, Bp - B)))
        eps_t = jnp.pad(eps_t, ((0, 0), (0, Bp - B)))

    kernel = functools.partial(_actor_kernel, float(act_limit), A, H1, H2,
                               off1, off2, off3)

    out = pl.pallas_call(
        kernel,
        out_shape=jax.ShapeDtypeStruct((2 * A, Bp), jnp.float32),
        grid_spec=pltpu.PrefetchScalarGridSpec(
            num_scalar_prefetch=0,
            grid=(Bp // bb,),
            in_specs=[
                pl.BlockSpec((S, bb), lambda i: (0, i)),        # state^T (batch-tiled)
                pl.BlockSpec((A, bb), lambda i: (0, i)),        # eps^T   (batch-tiled)
                pl.BlockSpec((H1, S), lambda i: (0, 0)),        # w1^T  (VMEM-resident)
                pl.BlockSpec((H2, H1), lambda i: (0, 0)),       # w2^T  (VMEM-resident)
                pl.BlockSpec((2 * A, H2), lambda i: (0, 0)),    # fused head weight^T
                pl.BlockSpec((128, 1), lambda i: (0, 0)),       # packed bias column
            ],
            out_specs=pl.BlockSpec((2 * A, bb), lambda i: (0, i)),
        ),
        compiler_params=pltpu.CompilerParams(
            dimension_semantics=("parallel",)),
    )(state_t, eps_t, w1t, w2t, wht, bcol)

    # TODO(synk): on v7x, verify in a trace that the batch grid is actually
    # shared across both TensorCores; plain "parallel" has near-zero measured
    # effect and may need CORE_PARALLEL / core_map if one TC sits idle.

    return out[:A, :B].T, out[A:, :B].T


def actor_reference(state, eps, params, act_limit):
    """Pure-JAX reference of the PyTorch module (with eps as the rsample noise)."""
    h = jax.nn.relu(state @ params["w1"] + params["b1"])
    h = jax.nn.relu(h @ params["w2"] + params["b2"])
    mu = h @ params["wm"] + params["bm"]
    log_std = jnp.clip(h @ params["ws"] + params["bs"], 1e-6, 1.0)
    std = jnp.exp(log_std)
    u = mu + std * eps
    log_mu = -0.5 * eps * eps - log_std - _HALF_LOG_2PI
    log_pi = log_mu - 2.0 * (_LOG_2 - u - jax.nn.softplus(-2.0 * u))
    action = act_limit * jnp.tanh(u)
    return action, log_pi


def init_params(key, num_states, num_actions, h1, h2):
    """Deterministic synthetic parameters (PyTorch-like uniform fan-in init)."""
    ks = jax.random.split(key, 8)

    def lin(kw, kb, fan_in, fan_out):
        bound = 1.0 / math.sqrt(fan_in)
        w = jax.random.uniform(kw, (fan_in, fan_out), jnp.float32, -bound, bound)
        b = jax.random.uniform(kb, (1, fan_out), jnp.float32, -bound, bound)
        return w, b

    w1, b1 = lin(ks[0], ks[1], num_states, h1)
    w2, b2 = lin(ks[2], ks[3], h1, h2)
    wm, bm = lin(ks[4], ks[5], h2, num_actions)
    ws, bs = lin(ks[6], ks[7], h2, num_actions)
    return dict(w1=w1, b1=b1, w2=w2, b2=b2, wm=wm, bm=bm, ws=ws, bs=bs)


if __name__ == "__main__":
    num_states, num_actions = 16, 4
    num_hidden_l1, num_hidden_l2 = 32, 32
    act_limit = 1.0
    batch = 256  # single grid step; 256 batch-lanes also fills the v6e/v7x MXU width

    key = jax.random.PRNGKey(0)
    k_param, k_state, k_eps = jax.random.split(key, 3)

    params = init_params(k_param, num_states, num_actions,
                         num_hidden_l1, num_hidden_l2)
    packed = pack_actor_params(params)   # hoisted: built once, reused every call

    state = jax.random.normal(k_state, (batch, num_states), jnp.float32)
    eps = jax.random.normal(k_eps, (batch, num_actions), jnp.float32)

    action, log_pi = actor_forward(state, eps, packed, act_limit)
    jax.block_until_ready((action, log_pi))

    # shape/dtype parity with the PyTorch module's (action, log_pi) outputs
    assert action.shape == (batch, num_actions) and log_pi.shape == (batch, num_actions)
    assert action.dtype == jnp.float32 and log_pi.dtype == jnp.float32

    # numerical parity with a pure-JAX reference (exact tanh/softplus formulas)
    ref_action, ref_log_pi = actor_reference(state, eps, params, act_limit)
    assert jnp.allclose(action, ref_action, atol=1e-3, rtol=1e-3), \
        float(jnp.max(jnp.abs(action - ref_action)))
    assert jnp.allclose(log_pi, ref_log_pi, atol=1e-3, rtol=1e-3), \
        float(jnp.max(jnp.abs(log_pi - ref_log_pi)))

    print("KERNEL_OK")
</pallas_src>

<mosaic_0001>
module attributes {stable_mosaic.version = 11 : i64} {
  func.func @_actor_kernel(%arg0: i32, %arg1: memref<16x256xf32, #tpu.memory_space<vmem>>, %arg2: memref<4x256xf32, #tpu.memory_space<vmem>>, %arg3: memref<32x16xf32, #tpu.memory_space<vmem>>, %arg4: memref<32x32xf32, #tpu.memory_space<vmem>>, %arg5: memref<8x32xf32, #tpu.memory_space<vmem>>, %arg6: memref<128x1xf32, #tpu.memory_space<vmem>>, %arg7: memref<8x256xf32, #tpu.memory_space<vmem>>) attributes {dimension_semantics = [#tpu.dimension_semantics<parallel>], iteration_bounds = array<i64: 1>, scalar_prefetch = 0 : i64, scratch_operands = 0 : i64, tpu.core_type = #tpu.core_type<tc>, window_params = [{transform_indices = @transform_0, window_bounds = array<i64: 16, 256>}, {transform_indices = @transform_1, window_bounds = array<i64: 4, 256>}, {pipeline_mode = #tpu.pipeline_mode<synchronous>, transform_indices = @transform_2, window_bounds = array<i64: 32, 16>}, {pipeline_mode = #tpu.pipeline_mode<synchronous>, transform_indices = @transform_3, window_bounds = array<i64: 32, 32>}, {pipeline_mode = #tpu.pipeline_mode<synchronous>, transform_indices = @transform_4, window_bounds = array<i64: 8, 32>}, {pipeline_mode = #tpu.pipeline_mode<synchronous>, transform_indices = @transform_5, window_bounds = array<i64: 128, 1>}, {transform_indices = @transform_6, window_bounds = array<i64: 8, 256>}]} {
    %c0 = arith.constant 0 : index
    %c0_0 = arith.constant 0 : index
    %0 = vector.load %arg1[%c0, %c0_0] : memref<16x256xf32, #tpu.memory_space<vmem>>, vector<16x256xf32>
    %c0_1 = arith.constant 0 : index
    %c0_2 = arith.constant 0 : index
    %1 = vector.load %arg3[%c0_1, %c0_2] : memref<32x16xf32, #tpu.memory_space<vmem>>, vector<32x16xf32>
    %cst = arith.constant dense<0.000000e+00> : vector<32x256xf32>
    %2 = tpu.matmul %1, %0, %cst {dimension_numbers = #tpu.dot_dimension_numbers<[1], [0], [0], [1], [0, 0, 1, 1], [], []>} : vector<32x16xf32>, vector<16x256xf32>, vector<32x256xf32> -> vector<32x256xf32>
    %c0_3 = arith.constant 0 : index
    %c0_4 = arith.constant 0 : index
    %3 = vector.load %arg6[%c0_3, %c0_4] : memref<128x1xf32, #tpu.memory_space<vmem>>, vector<32x1xf32>
    %4 = vector.broadcast %3 : vector<32x1xf32> to vector<32x256xf32>
    %5 = arith.addf %2, %4 : vector<32x256xf32>
    %cst_5 = arith.constant 0.000000e+00 : f32
    %6 = vector.broadcast %cst_5 : f32 to vector<32x256xf32>
    %7 = arith.maximumf %5, %6 : vector<32x256xf32>
    %c0_6 = arith.constant 0 : index
    %c0_7 = arith.constant 0 : index
    %8 = vector.load %arg4[%c0_6, %c0_7] : memref<32x32xf32, #tpu.memory_space<vmem>>, vector<32x32xf32>
    %cst_8 = arith.constant dense<0.000000e+00> : vector<32x256xf32>
    %9 = tpu.matmul %8, %7, %cst_8 {dimension_numbers = #tpu.dot_dimension_numbers<[1], [0], [0], [1], [0, 0, 1, 1], [], []>} : vector<32x32xf32>, vector<32x256xf32>, vector<32x256xf32> -> vector<32x256xf32>
    %c32 = arith.constant 32 : index
    %c0_9 = arith.constant 0 : index
    %10 = vector.load %arg6[%c32, %c0_9] : memref<128x1xf32, #tpu.memory_space<vmem>>, vector<32x1xf32>
    %11 = vector.broadcast %10 : vector<32x1xf32> to vector<32x256xf32>
    %12 = arith.addf %9, %11 : vector<32x256xf32>
    %cst_10 = arith.constant 0.000000e+00 : f32
    %13 = vector.broadcast %cst_10 : f32 to vector<32x256xf32>
    %14 = arith.maximumf %12, %13 : vector<32x256xf32>
    %c0_11 = arith.constant 0 : index
    %c0_12 = arith.constant 0 : index
    %15 = vector.load %arg5[%c0_11, %c0_12] : memref<8x32xf32, #tpu.memory_space<vmem>>, vector<8x32xf32>
    %cst_13 = arith.constant dense<0.000000e+00> : vector<8x256xf32>
    %16 = tpu.matmul %15, %14, %cst_13 {dimension_numbers = #tpu.dot_dimension_numbers<[1], [0], [0], [1], [0, 0, 1, 1], [], []>} : vector<8x32xf32>, vector<32x256xf32>, vector<8x256xf32> -> vector<8x256xf32>
    %c64 = arith.constant 64 : index
    %c0_14 = arith.constant 0 : index
    %17 = vector.load %arg6[%c64, %c0_14] : memref<128x1xf32, #tpu.memory_space<vmem>>, vector<8x1xf32>
    %18 = vector.broadcast %17 : vector<8x1xf32> to vector<8x256xf32>
    %19 = arith.addf %16, %18 : vector<8x256xf32>
    %20 = vector.extract_strided_slice %19 {offsets = [0, 0], sizes = [4, 256], strides = [1, 1]} : vector<8x256xf32> to vector<4x256xf32>
    %21 = vector.extract_strided_slice %19 {offsets = [4, 0], sizes = [4, 256], strides = [1, 1]} : vector<8x256xf32> to vector<4x256xf32>
    %cst_15 = arith.constant 9.99999997E-7 : f32
    %cst_16 = arith.constant 1.000000e+00 : f32
    %22 = vector.broadcast %cst_15 : f32 to vector<4x256xf32>
    %23 = arith.maximumf %22, %21 : vector<4x256xf32>
    %24 = vector.broadcast %cst_16 : f32 to vector<4x256xf32>
    %25 = arith.minimumf %24, %23 : vector<4x256xf32>
    %26 = math.exp %25 : vector<4x256xf32>
    %c0_17 = arith.constant 0 : index
    %c0_18 = arith.constant 0 : index
    %27 = vector.load %arg2[%c0_17, %c0_18] : memref<4x256xf32, #tpu.memory_space<vmem>>, vector<4x256xf32>
    %28 = arith.mulf %26, %27 : vector<4x256xf32>
    %29 = arith.addf %20, %28 : vector<4x256xf32>
    %cst_19 = arith.constant -5.000000e-01 : f32
    %30 = vector.broadcast %cst_19 : f32 to vector<4x256xf32>
    %31 = arith.mulf %30, %27 : vector<4x256xf32>
    %32 = arith.mulf %31, %27 : vector<4x256xf32>
    %33 = arith.subf %32, %25 : vector<4x256xf32>
    %cst_20 = arith.constant 0.918938517 : f32
    %34 = vector.broadcast %cst_20 : f32 to vector<4x256xf32>
    %35 = arith.subf %33, %34 : vector<4x256xf32>
    %36 = math.absf %29 : vector<4x256xf32>
    %cst_21 = arith.constant -2.000000e+00 : f32
    %37 = vector.broadcast %cst_21 : f32 to vector<4x256xf32>
    %38 = arith.mulf %37, %36 : vector<4x256xf32>
    %39 = math.exp %38 : vector<4x256xf32>
    %cst_22 = arith.constant -2.000000e+00 : f32
    %40 = vector.broadcast %cst_22 : f32 to vector<4x256xf32>
    %41 = arith.mulf %40, %29 : vector<4x256xf32>
    %cst_23 = arith.constant 0.000000e+00 : f32
    %42 = vector.broadcast %cst_23 : f32 to vector<4x256xf32>
    %43 = arith.maximumf %41, %42 : vector<4x256xf32>
    %44 = math.log1p %39 : vector<4x256xf32>
    %45 = arith.addf %43, %44 : vector<4x256xf32>
    %cst_24 = arith.constant 0.693147182 : f32
    %46 = vector.broadcast %cst_24 : f32 to vector<4x256xf32>
    %47 = arith.subf %46, %29 : vector<4x256xf32>
    %48 = arith.subf %47, %45 : vector<4x256xf32>
    %cst_25 = arith.constant 2.000000e+00 : f32
    %49 = vector.broadcast %cst_25 : f32 to vector<4x256xf32>
    %50 = arith.mulf %49, %48 : vector<4x256xf32>
    %51 = arith.subf %35, %50 : vector<4x256xf32>
    %cst_26 = arith.constant 0.000000e+00 : f32
    %52 = vector.broadcast %cst_26 : f32 to vector<4x256xf32>
    %53 = arith.cmpf oge, %29, %52 : vector<4x256xf32>
    %cst_27 = arith.constant 1.000000e+00 : f32
    %cst_28 = arith.constant -1.000000e+00 : f32
    %54 = vector.broadcast %cst_27 : f32 to vector<4x256xf32>
    %55 = vector.broadcast %cst_28 : f32 to vector<4x256xf32>
    %56 = arith.select %53, %54, %55 : vector<4x256xi1>, vector<4x256xf32>
    %cst_29 = arith.constant 1.000000e+00 : f32
    %57 = vector.broadcast %cst_29 : f32 to vector<4x256xf32>
    %58 = arith.subf %57, %39 : vector<4x256xf32>
    %59 = arith.mulf %56, %58 : vector<4x256xf32>
    %cst_30 = arith.constant 1.000000e+00 : f32
    %60 = vector.broadcast %cst_30 : f32 to vector<4x256xf32>
    %61 = arith.addf %60, %39 : vector<4x256xf32>
    %62 = arith.divf %59, %61 : vector<4x256xf32>
    %cst_31 = arith.constant 1.000000e+00 : f32
    %63 = vector.broadcast %cst_31 : f32 to vector<4x256xf32>
    %64 = arith.mulf %63, %62 : vector<4x256xf32>
    %c0_32 = arith.constant 0 : index
    %c0_33 = arith.constant 0 : index
    %65 = vector.load %arg7[%c0_32, %c0_33] : memref<8x256xf32, #tpu.memory_space<vmem>>, vector<4x256xf32>
    tpu.vector_store %arg7[%c0_32, %c0_33], %64 {strides = array<i32>} : memref<8x256xf32, #tpu.memory_space<vmem>>, vector<4x256xf32>,
    %c4 = arith.constant 4 : index
    %c0_34 = arith.constant 0 : index
    %66 = vector.load %arg7[%c4, %c0_34] : memref<8x256xf32, #tpu.memory_space<vmem>>, vector<4x256xf32>
    tpu.vector_store %arg7[%c4, %c0_34], %51 {strides = array<i32>} : memref<8x256xf32, #tpu.memory_space<vmem>>, vector<4x256xf32>,
    return
  }
  func.func @transform_0(%arg0: i32) -> (i32, i32) {
    %c0_i32 = arith.constant 0 : i32
    %c0_i32_0 = arith.constant 0 : i32
    return %c0_i32, %arg0 : i32, i32
  }
  func.func @transform_1(%arg0: i32) -> (i32, i32) {
    %c0_i32 = arith.constant 0 : i32
    %c0_i32_0 = arith.constant 0 : i32
    return %c0_i32, %arg0 : i32, i32
  }
  func.func @transform_2(%arg0: i32) -> (i32, i32) {
    %c0_i32 = arith.constant 0 : i32
    %c0_i32_0 = arith.constant 0 : i32
    %c0_i32_1 = arith.constant 0 : i32
    return %c0_i32, %c0_i32_0 : i32, i32
  }
  func.func @transform_3(%arg0: i32) -> (i32, i32) {
    %c0_i32 = arith.constant 0 : i32
    %c0_i32_0 = arith.constant 0 : i32
    %c0_i32_1 = arith.constant 0 : i32
    return %c0_i32, %c0_i32_0 : i32, i32
  }
  func.func @transform_4(%arg0: i32) -> (i32, i32) {
    %c0_i32 = arith.constant 0 : i32
    %c0_i32_0 = arith.constant 0 : i32
    %c0_i32_1 = arith.constant 0 : i32
    return %c0_i32, %c0_i32_0 : i32, i32
  }
  func.func @transform_5(%arg0: i32) -> (i32, i32) {
    %c0_i32 = arith.constant 0 : i32
    %c0_i32_0 = arith.constant 0 : i32
    %c0_i32_1 = arith.constant 0 : i32
    return %c0_i32, %c0_i32_0 : i32, i32
  }
  func.func @transform_6(%arg0: i32) -> (i32, i32) {
    %c0_i32 = arith.constant 0 : i32
    %c0_i32_0 = arith.constant 0 : i32
    return %c0_i32, %arg0 : i32, i32
  }
}

</mosaic_0001>

<llo_original>
// kernel: tpu_custom_call.1
$region0: #{tpu_custom_call.1}
  #allocation0 [shape = 'u32[]', space=smem, size = 0x4, offset = 0x4, fixed_abs, tag = 'smem constant byte address 0x4 - core index']
  #allocation1 [shape = 'u32[144,128]{1,0:T(1,128)}', space=vmem, size = 0x12000, scoped, tag = 'internal scratch']
  %s0 = inlined_call_operand.vmem [shape: f32[16,256], index: 0, kind: input, shape index: {}]
  %s1 = inlined_call_operand.vmem [shape: f32[4,256], index: 1, kind: input, shape index: {}]
  %s2 = inlined_call_operand.vmem [shape: f32[32,16], index: 2, kind: input, shape index: {}]
  %s3 = inlined_call_operand.vmem [shape: f32[32,32], index: 3, kind: input, shape index: {}]
  %s4 = inlined_call_operand.vmem [shape: f32[8,32], index: 4, kind: input, shape index: {}]
  %s5 = inlined_call_operand.vmem [shape: f32[128,1], index: 5, kind: input, shape index: {}]
  %s6 = inlined_call_operand.hbm [shape: f32[8,256], index: 6, kind: output, shape index: {}]
  %s7 = sld [smem:[#allocation0]]
  $region34: #{tpu_custom_call.1} parent=0
    _
  %s9 = ssub.s32 1, %s7
  %s10 = scalar_select 0, %s9, %s7
  $region1: #{tpu_custom_call.1} parent=0
    #allocation2 [shape = 'u8[8192]{0}', space=vmem, size = 0x2000, scoped, tag = 'output window, operand 0, single buffered']
    #allocation3 [shape = 's32[1]{0}', space=sflag, size = 0x4, scoped, tag = 'scoped memory for tpu_custom_call.1']
    %11 = vsyncpa [#allocation3], 0
    // Predicated region
    $region2: #{tpu_custom_call.1} parent=1 // pred_check
      _
    $region3: #{tpu_custom_call.1} parent=1 // pred_check_branch
      %13 = sbr.rel (0) target = $region5
    $region4: #{tpu_custom_call.1} parent=1 // pred_region
      _
    $region5: #{tpu_custom_call.1} parent=1 // pred_fallthru
      _
    // Predicated region
    $region6: #{tpu_custom_call.1} parent=1 // pred_check
      _
    $region7: #{tpu_custom_call.1} parent=1 // pred_check_branch
      %15 = sbr.rel (0) target = $region9
    $region8: #{tpu_custom_call.1} parent=1 // pred_region
      _
    $region9: #{tpu_custom_call.1} parent=1 // pred_fallthru
      _
    // Predicated region
    $region10: #{tpu_custom_call.1} parent=1 // pred_check
      _
    $region11: #{tpu_custom_call.1} parent=1 // pred_check_branch
      %17 = sbr.rel (0) target = $region13
    $region12: #{tpu_custom_call.1} parent=1 // pred_region
      _
    $region13: #{tpu_custom_call.1} parent=1 // pred_fallthru
      _
    // Predicated region
    $region14: #{tpu_custom_call.1} parent=1 // pred_check
      _
    $region15: #{tpu_custom_call.1} parent=1 // pred_check_branch
      %19 = sbr.rel (0) target = $region17
    $region16: #{tpu_custom_call.1} parent=1 // pred_region
      _
    $region17: #{tpu_custom_call.1} parent=1 // pred_fallthru
      _
    // Predicated region
    $region18: #{tpu_custom_call.1} parent=1 // pred_check
      _
    $region19: #{tpu_custom_call.1} parent=1 // pred_check_branch
      %21 = sbr.rel (0) target = $region21
    $region20: #{tpu_custom_call.1} parent=1 // pred_region
      _
    $region21: #{tpu_custom_call.1} parent=1 // pred_fallthru
      _
    // Predicated region
    $region22: #{tpu_custom_call.1} parent=1 // pred_check
      _
    $region23: #{tpu_custom_call.1} parent=1 // pred_check_branch
      %23 = sbr.rel (0) target = $region25
    $region24: #{tpu_custom_call.1} parent=1 // pred_region
      _
    $region25: #{tpu_custom_call.1} parent=1 // pred_fallthru
      _
    %v24 = vld [vmem:[%s0] sm:$0xff]
    %v25 = vld [vmem:[%s0 + $0x8] sm:$0xff]
    %v26 = vld [vmem:[%s0 + $0x10] sm:$0xff]
    %v27 = vld [vmem:[%s0 + $0x18] sm:$0xff]
    %v28 = vld [vmem:[%s2] sm:$0xff]
    %v29 = vld [vmem:[%s2 + $0x8] sm:$0xff]
    %v30 = vld [vmem:[%s2 + $0x10] sm:$0xff]
    %v31 = vld [vmem:[%s2 + $0x18] sm:$0xff]
    %v32 = vld [vmem:[%s5] sm:$0xff]
    %v33 = vld [vmem:[%s5 + $0x8] sm:$0xff]
    %v34 = vld [vmem:[%s5 + $0x10] sm:$0xff]
    %v35 = vld [vmem:[%s5 + $0x18] sm:$0xff]
    %37 = vset.pattern.permute.xlu0 0
    %38 = vperm.xlu0 %37, %v32
    %v39 = vpop.permute.xlu0 %38
    %42 = vset.pattern.permute.xlu0 0
    %43 = vperm.xlu0 %42, %v33
    %v44 = vpop.permute.xlu0 %43
    %47 = vset.pattern.permute.xlu0 0
    %48 = vperm.xlu0 %47, %v34
    %v49 = vpop.permute.xlu0 %48
    %52 = vset.pattern.permute.xlu0 0
    %53 = vperm.xlu0 %52, %v35
    %v54 = vpop.permute.xlu0 %53
    %vm56 = vcmask 130048
    %v58 = vsel %vm56, %v28, 0
    %v61 = vsel %vm56, %v29, 0
    %v64 = vsel %vm56, %v30, 0
    %v67 = vsel %vm56, %v31, 0
    %69 = vmatprep.subr.mxu0 0.0
    %70 = vmatpush1.msra.mxu0 0.0
    %71 = vmatprep.subr.mxu0 0.0
    %72 = vmatpush1.msra.mxu0 0.0
    %73 = vmatprep.subr.mxu0 0.0
    %74 = vmatpush1.msra.mxu0 0.0
    %75 = vmatprep.subr.mxu0 0.0
    %76 = vmatpush1.msra.mxu0 0.0
    %77 = vmatprep.subr.mxu0 0.0
    %78 = vmatpush1.msra.mxu0 0.0
    %79 = vmatprep.subr.mxu0 0.0
    %80 = vmatpush1.msra.mxu0 0.0
    %81 = vmatprep.subr.mxu0 0.0
    %82 = vmatpush1.msra.mxu0 0.0
    %83 = vmatprep.subr.mxu0 0.0
    %84 = vmatpush1.msra.mxu0 0.0
    %85 = vmatprep.subr.mxu0 0.0
    %86 = vmatpush1.msra.mxu0 0.0
    %87 = vmatprep.subr.mxu0 0.0
    %88 = vmatpush1.msra.mxu0 0.0
    %89 = vmatprep.subr.mxu0 0.0
    %90 = vmatpush1.msra.mxu0 0.0
    %91 = vmatprep.subr.mxu0 0.0
    %92 = vmatpush1.msra.mxu0 0.0
    %93 = vmatprep.subr.mxu0 0.0
    %94 = vmatpush1.msra.mxu0 0.0
    %95 = vmatprep.subr.mxu0 0.0
    %96 = vmatpush1.msra.mxu0 0.0
    %97 = vmatprep.subr.mxu0 %v27
    %98 = vmatpush1.msra.mxu0 %v26
    %99 = vmatprep.subr.mxu0 %v25
    %100 = vmatpush1.msra.mxu0 %v24
    %101 = vmatprep.subr.mxu0 0.0
    %102 = vmatpush2.msra.mxu0 0.0
    %103 = vmatprep.subr.mxu0 0.0
    %104 = vmatpush2.msra.mxu0 0.0
    %105 = vmatprep.subr.mxu0 0.0
    %106 = vmatpush2.msra.mxu0 0.0
    %107 = vmatprep.subr.mxu0 0.0
    %108 = vmatpush2.msra.mxu0 0.0
    %109 = vmatprep.subr.mxu0 0.0
    %110 = vmatpush2.msra.mxu0 0.0
    %111 = vmatprep.subr.mxu0 0.0
    %112 = vmatpush2.msra.mxu0 0.0
    %113 = vmatprep.subr.mxu0 0.0
    %114 = vmatpush2.msra.mxu0 0.0
    %115 = vmatprep.subr.mxu0 0.0
    %116 = vmatpush2.msra.mxu0 0.0
    %117 = vmatprep.subr.mxu0 0.0
    %118 = vmatpush2.msra.mxu0 0.0
    %119 = vmatprep.subr.mxu0 0.0
    %120 = vmatpush2.msra.mxu0 0.0
    %121 = vmatprep.subr.mxu0 0.0
    %122 = vmatpush2.msra.mxu0 0.0
    %123 = vmatprep.subr.mxu0 0.0
    %124 = vmatpush2.msra.mxu0 0.0
    %125 = vmatprep.subr.mxu0 0.0
    %126 = vmatpush2.msra.mxu0 0.0
    %127 = vmatprep.subr.mxu0 0.0
    %128 = vmatpush2.msra.mxu0 0.0
    %129 = vmatprep.subr.mxu0 0.0
    %130 = vmatpush2.msra.mxu0 0.0
    %131 = vmatprep.subr.mxu0 0.0
    %132 = vmatpush2.msra.mxu0 0.0
    %133 = vmatprep.mubr.f32.mxu0 0.0
    %134 = vmatmul.mubr.f32.gmra.mxu0 %v58
    %v135 = vpop.f32.mrf.mxu0
    %v136 = vadd.f32 %v39, %v135
    %v137 = vpop.f32.mrf.mxu0
    %v138 = vadd.f32 %v39, %v137
    %139 = vmatprep.mubr.f32.mxu0 0.0
    %140 = vmatmul.mubr.f32.gmra.mxu0 %v61
    %v141 = vpop.f32.mrf.mxu0
    %v142 = vadd.f32 %v44, %v141
    %v143 = vpop.f32.mrf.mxu0
    %v144 = vadd.f32 %v44, %v143
    %145 = vmatprep.mubr.f32.mxu0 0.0
    %146 = vmatmul.mubr.f32.gmra.mxu0 %v64
    %v147 = vpop.f32.mrf.mxu0
    %v148 = vadd.f32 %v49, %v147
    %v149 = vpop.f32.mrf.mxu0
    %v150 = vadd.f32 %v49, %v149
    %151 = vmatprep.mubr.f32.mxu0 0.0
    %152 = vmatmul.mubr.f32.gmra.mxu0 %v67
    %v153 = vpop.f32.mrf.mxu0
    %v154 = vadd.f32 %v54, %v153
    %v155 = vpop.f32.mrf.mxu0
    %v156 = vadd.f32 %v54, %v155
    %157 = vdwg.mxu0
    %v158 = vmax.f32 %v136, 0.0
    %v159 = vmax.f32 %v138, 0.0
    %v160 = vmax.f32 %v142, 0.0
    %v161 = vmax.f32 %v144, 0.0
    %v162 = vmax.f32 %v148, 0.0
    %v163 = vmax.f32 %v150, 0.0
    %v164 = vmax.f32 %v154, 0.0
    %v165 = vmax.f32 %v156, 0.0
    %v166 = vld [vmem:[%s3] sm:$0xff]
    %v167 = vld [vmem:[%s3 + $0x8] sm:$0xff]
    %v168 = vld [vmem:[%s3 + $0x10] sm:$0xff]
    %v169 = vld [vmem:[%s3 + $0x18] sm:$0xff]
    %v170 = vld [vmem:[%s5 + $0x20] sm:$0xff]
    %v171 = vld [vmem:[%s5 + $0x28] sm:$0xff]
    %v172 = vld [vmem:[%s5 + $0x30] sm:$0xff]
    %v173 = vld [vmem:[%s5 + $0x38] sm:$0xff]
    %175 = vset.pattern.permute.xlu0 0
    %176 = vperm.xlu0 %175, %v170
    %v177 = vpop.permute.xlu0 %176
    %180 = vset.pattern.permute.xlu0 0
    %181 = vperm.xlu0 %180, %v171
    %v182 = vpop.permute.xlu0 %181
    %185 = vset.pattern.permute.xlu0 0
    %186 = vperm.xlu0 %185, %v172
    %v187 = vpop.permute.xlu0 %186
    %190 = vset.pattern.permute.xlu0 0
    %191 = vperm.xlu0 %190, %v173
    %v192 = vpop.permute.xlu0 %191
    %vm194 = vcmask 261120
    %v196 = vsel %vm194, %v166, 0
    %v199 = vsel %vm194, %v167, 0
    %v202 = vsel %vm194, %v168, 0
    %v205 = vsel %vm194, %v169, 0
    %207 = vmatprep.subr.mxu0 0.0
    %208 = vmatpush1.msra.mxu0 0.0
    %209 = vmatprep.subr.mxu0 0.0
    %210 = vmatpush1.msra.mxu0 0.0
    %211 = vmatprep.subr.mxu0 0.0
    %212 = vmatpush1.msra.mxu0 0.0
    %213 = vmatprep.subr.mxu0 0.0
    %214 = vmatpush1.msra.mxu0 0.0
    %215 = vmatprep.subr.mxu0 0.0
    %216 = vmatpush1.msra.mxu0 0.0
    %217 = vmatprep.subr.mxu0 0.0
    %218 = vmatpush1.msra.mxu0 0.0
    %219 = vmatprep.subr.mxu0 0.0
    %220 = vmatpush1.msra.mxu0 0.0
    %221 = vmatprep.subr.mxu0 0.0
    %222 = vmatpush1.msra.mxu0 0.0
    %223 = vmatprep.subr.mxu0 0.0
    %224 = vmatpush1.msra.mxu0 0.0
    %225 = vmatprep.subr.mxu0 0.0
    %226 = vmatpush1.msra.mxu0 0.0
    %227 = vmatprep.subr.mxu0 0.0
    %228 = vmatpush1.msra.mxu0 0.0
    %229 = vmatprep.subr.mxu0 0.0
    %230 = vmatpush1.msra.mxu0 0.0
    %231 = vmatprep.subr.mxu0 %v165
    %232 = vmatpush1.msra.mxu0 %v164
    %233 = vmatprep.subr.mxu0 %v163
    %234 = vmatpush1.msra.mxu0 %v162
    %235 = vmatprep.subr.mxu0 %v161
    %236 = vmatpush1.msra.mxu0 %v160
    %237 = vmatprep.subr.mxu0 %v159
    %238 = vmatpush1.msra.mxu0 %v158
    %239 = vmatprep.subr.mxu0 0.0
    %240 = vmatpush2.msra.mxu0 0.0
    %241 = vmatprep.subr.mxu0 0.0
    %242 = vmatpush2.msra.mxu0 0.0
    %243 = vmatprep.subr.mxu0 0.0
    %244 = vmatpush2.msra.mxu0 0.0
    %245 = vmatprep.subr.mxu0 0.0
    %246 = vmatpush2.msra.mxu0 0.0
    %247 = vmatprep.subr.mxu0 0.0
    %248 = vmatpush2.msra.mxu0 0.0
    %249 = vmatprep.subr.mxu0 0.0
    %250 = vmatpush2.msra.mxu0 0.0
    %251 = vmatprep.subr.mxu0 0.0
    %252 = vmatpush2.msra.mxu0 0.0
    %253 = vmatprep.subr.mxu0 0.0
    %254 = vmatpush2.msra.mxu0 0.0
    %255 = vmatprep.subr.mxu0 0.0
    %256 = vmatpush2.msra.mxu0 0.0
    %257 = vmatprep.subr.mxu0 0.0
    %258 = vmatpush2.msra.mxu0 0.0
    %259 = vmatprep.subr.mxu0 0.0
    %260 = vmatpush2.msra.mxu0 0.0
    %261 = vmatprep.subr.mxu0 0.0
    %262 = vmatpush2.msra.mxu0 0.0
    %263 = vmatprep.subr.mxu0 0.0
    %264 = vmatpush2.msra.mxu0 0.0
    %265 = vmatprep.subr.mxu0 0.0
    %266 = vmatpush2.msra.mxu0 0.0
    %267 = vmatprep.subr.mxu0 0.0
    %268 = vmatpush2.msra.mxu0 0.0
    %269 = vmatprep.subr.mxu0 0.0
    %270 = vmatpush2.msra.mxu0 0.0
    %271 = vmatprep.mubr.f32.mxu0 0.0
    %272 = vmatmul.mubr.f32.gmra.mxu0 %v196
    %v273 = vpop.f32.mrf.mxu0
    %v274 = vadd.f32 %v177, %v273
    %v275 = vpop.f32.mrf.mxu0
    %v276 = vadd.f32 %v177, %v275
    %277 = vmatprep.mubr.f32.mxu0 0.0
    %278 = vmatmul.mubr.f32.gmra.mxu0 %v199
    %v279 = vpop.f32.mrf.mxu0
    %v280 = vadd.f32 %v182, %v279
    %v281 = vpop.f32.mrf.mxu0
    %v282 = vadd.f32 %v182, %v281
    %283 = vmatprep.mubr.f32.mxu0 0.0
    %284 = vmatmul.mubr.f32.gmra.mxu0 %v202
    %v285 = vpop.f32.mrf.mxu0
    %v286 = vadd.f32 %v187, %v285
    %v287 = vpop.f32.mrf.mxu0
    %v288 = vadd.f32 %v187, %v287
    %289 = vmatprep.mubr.f32.mxu0 0.0
    %290 = vmatmul.mubr.f32.gmra.mxu0 %v205
    %v291 = vpop.f32.mrf.mxu0
    %v292 = vadd.f32 %v192, %v291
    %v293 = vpop.f32.mrf.mxu0
    %v294 = vadd.f32 %v192, %v293
    %295 = vdwg.mxu0
    %v296 = vmax.f32 %v274, 0.0
    %v297 = vmax.f32 %v276, 0.0
    %v298 = vmax.f32 %v280, 0.0
    %v299 = vmax.f32 %v282, 0.0
    %v300 = vmax.f32 %v286, 0.0
    %v301 = vmax.f32 %v288, 0.0
    %v302 = vmax.f32 %v292, 0.0
    %v303 = vmax.f32 %v294, 0.0
    %v304 = vld [vmem:[%s4] sm:$0xff]
    %v305 = vld [vmem:[%s5 + $0x40] sm:$0xff]
    %307 = vset.pattern.permute.xlu0 0
    %308 = vperm.xlu0 %307, %v305
    %v309 = vpop.permute.xlu0 %308
    %v312 = vsel %vm194, %v304, 0
    %314 = vmatprep.subr.mxu0 0.0
    %315 = vmatpush1.msra.mxu0 0.0
    %316 = vmatprep.subr.mxu0 0.0
    %317 = vmatpush1.msra.mxu0 0.0
    %318 = vmatprep.subr.mxu0 0.0
    %319 = vmatpush1.msra.mxu0 0.0
    %320 = vmatprep.subr.mxu0 0.0
    %321 = vmatpush1.msra.mxu0 0.0
    %322 = vmatprep.subr.mxu0 0.0
    %323 = vmatpush1.msra.mxu0 0.0
    %324 = vmatprep.subr.mxu0 0.0
    %325 = vmatpush1.msra.mxu0 0.0
    %326 = vmatprep.subr.mxu0 0.0
    %327 = vmatpush1.msra.mxu0 0.0
    %328 = vmatprep.subr.mxu0 0.0
    %329 = vmatpush1.msra.mxu0 0.0
    %330 = vmatprep.subr.mxu0 0.0
    %331 = vmatpush1.msra.mxu0 0.0
    %332 = vmatprep.subr.mxu0 0.0
    %333 = vmatpush1.msra.mxu0 0.0
    %334 = vmatprep.subr.mxu0 0.0
    %335 = vmatpush1.msra.mxu0 0.0
    %336 = vmatprep.subr.mxu0 0.0
    %337 = vmatpush1.msra.mxu0 0.0
    %338 = vmatprep.subr.mxu0 %v303
    %339 = vmatpush1.msra.mxu0 %v302
    %340 = vmatprep.subr.mxu0 %v301
    %341 = vmatpush1.msra.mxu0 %v300
    %342 = vmatprep.subr.mxu0 %v299
    %343 = vmatpush1.msra.mxu0 %v298
    %344 = vmatprep.subr.mxu0 %v297
    %345 = vmatpush1.msra.mxu0 %v296
    %346 = vmatprep.subr.mxu0 0.0
    %347 = vmatpush2.msra.mxu0 0.0
    %348 = vmatprep.subr.mxu0 0.0
    %349 = vmatpush2.msra.mxu0 0.0
    %350 = vmatprep.subr.mxu0 0.0
    %351 = vmatpush2.msra.mxu0 0.0
    %352 = vmatprep.subr.mxu0 0.0
    %353 = vmatpush2.msra.mxu0 0.0
    %354 = vmatprep.subr.mxu0 0.0
    %355 = vmatpush2.msra.mxu0 0.0
    %356 = vmatprep.subr.mxu0 0.0
    %357 = vmatpush2.msra.mxu0 0.0
    %358 = vmatprep.subr.mxu0 0.0
    %359 = vmatpush2.msra.mxu0 0.0
    %360 = vmatprep.subr.mxu0 0.0
    %361 = vmatpush2.msra.mxu0 0.0
    %362 = vmatprep.subr.mxu0 0.0
    %363 = vmatpush2.msra.mxu0 0.0
    %364 = vmatprep.subr.mxu0 0.0
    %365 = vmatpush2.msra.mxu0 0.0
    %366 = vmatprep.subr.mxu0 0.0
    %367 = vmatpush2.msra.mxu0 0.0
    %368 = vmatprep.subr.mxu0 0.0
    %369 = vmatpush2.msra.mxu0 0.0
    %370 = vmatprep.subr.mxu0 0.0
    %371 = vmatpush2.msra.mxu0 0.0
    %372 = vmatprep.subr.mxu0 0.0
    %373 = vmatpush2.msra.mxu0 0.0
    %374 = vmatprep.subr.mxu0 0.0
    %375 = vmatpush2.msra.mxu0 0.0
    %376 = vmatprep.subr.mxu0 0.0
    %377 = vmatpush2.msra.mxu0 0.0
    %378 = vmatprep.mubr.f32.mxu0 0.0
    %379 = vmatmul.mubr.f32.gmra.mxu0 %v312
    %v380 = vpop.f32.mrf.mxu0
    %v381 = vadd.f32 %v309, %v380
    %v382 = vpop.f32.mrf.mxu0
    %v383 = vadd.f32 %v309, %v382
    %384 = vdwg.mxu0
    %v385 = vmax.f32 %v381, 1e-06
    %v386 = vmax.f32 %v383, 1e-06
    %v387 = vmin.f32 %v385, 1.0
    %v388 = vmin.f32 %v386, 1.0
    %v389 = vmul.f32 %v387, 1.442695
    %v390 = vpow.pop %v389
    %v391 = vmul.f32 %v388, 1.442695
    %v392 = vpow.pop %v391
    %v393 = vld [vmem:[%s1] sm:$0xff]
    %v395 = vcombine.low %v393, %v393
    %v397 = vmul.f32 %v390, %v395
    %v398 = vmul.f32 %v392, %v393
    %v401 = vrot.slane %v397, 4
    %v402 = vrot.slane %v398, 4
    %v405 = vadd.f32 %v381, %v401
    %v406 = vadd.f32 %v383, %v402
    %v407 = vmul.f32 %v393, -0.5
    %v408 = vmul.f32 %v407, %v393
    %v411 = vcombine.high %v387, %v388
    %v413 = vsub.f32 %v408, %v411
    %v414 = vsub.f32 %v413, 0.9189385
    %v415 = vand.u32 2147483647, %v405
    %v416 = vand.u32 2147483647, %v406
    %v417 = vmul.f32 %v415, -2.0
    %v418 = vmul.f32 %v416, -2.0
    %v419 = vmul.f32 %v417, 1.442695
    %v420 = vpow.pop %v419
    %v421 = vmul.f32 %v418, 1.442695
    %v422 = vpow.pop %v421
    %v423 = vmul.f32 %v405, -2.0
    %v424 = vmul.f32 %v406, -2.0
    %v425 = vmax.f32 %v423, 0.0
    %v426 = vmax.f32 %v424, 0.0
    %v427 = vadd.f32 %v420, 1.0
    %v428 = vlog2.pop %v427
    %v429 = vmul.f32 %v428, 0.6931472
    %v430 = vmul.f32 -0.5, %v420
    %v431 = vadd.f32 %v430, 1.0
    %v432 = vmul.f32 %v431, %v420
    %v433 = vand.u32 2147483647, %v420
    %vm434 = vcmp.lt.f32.partialorder %v433, 0.0004427343
    %v435 = vsel %vm434, %v432, %v429
    %v436 = vadd.f32 %v422, 1.0
    %v437 = vlog2.pop %v436
    %v438 = vmul.f32 %v437, 0.6931472
    %v439 = vmul.f32 -0.5, %v422
    %v440 = vadd.f32 %v439, 1.0
    %v441 = vmul.f32 %v440, %v422
    %v442 = vand.u32 2147483647, %v422
    %vm443 = vcmp.lt.f32.partialorder %v442, 0.0004427343
    %v444 = vsel %vm443, %v441, %v438
    %v445 = vadd.f32 %v425, %v435
    %v446 = vadd.f32 %v426, %v444
    %v447 = vsub.f32 0.6931472, %v405
    %v448 = vsub.f32 0.6931472, %v406
    %v449 = vsub.f32 %v447, %v445
    %v450 = vsub.f32 %v448, %v446
    %v451 = vmul.f32 %v449, 2.0
    %v452 = vmul.f32 %v450, 2.0
    %v455 = vcombine.low %v451, %v452
    %v457 = vsub.f32 %v414, %v455
    %vm458 = vcmp.ge.f32.partialorder %v405, 0.0
    %vm459 = vcmp.ge.f32.partialorder %v406, 0.0
    %v460 = vsel %vm458, 1.0, -1.0
    %v461 = vsel %vm459, 1.0, -1.0
    %v462 = vsub.f32 1.0, %v420
    %v463 = vsub.f32 1.0, %v422
    %v464 = vmul.f32 %v460, %v462
    %v465 = vmul.f32 %v461, %v463
    %v466 = vadd.f32 %v420, 1.0
    %v467 = vadd.f32 %v422, 1.0
    %v468 = vrcp.pop %v466
    %v469 = vmul.f32 %v464, %v468
    %v470 = vrcp.pop %v467
    %v471 = vmul.f32 %v465, %v470
    %472 = vst [vmem:[#allocation2] sm:$0xf] %v469
    %473 = vst [vmem:[#allocation2 + $0x8] sm:$0xf] %v471
    %v475 = vcombine.low %v457, %v457
    %477 = vst [vmem:[#allocation2] sm:$0xf0] %v475
    %478 = vst [vmem:[#allocation2 + $0x8] sm:$0xf0] %v457
    // Predicated region
    $region26: #{tpu_custom_call.1} parent=1 // pred_check
      _
    $region27: #{tpu_custom_call.1} parent=1 // pred_check_branch
      %480 = sbr.rel (0) target = $region29
    $region28: #{tpu_custom_call.1} parent=1 // pred_region
      %s482 = ssub.s32 256, 256
      %483 = vsyncadd [#allocation3], %s482
      %s485 = sshll.u32 [#allocation2], 4
      %s486 = int_to_ptr.vmem [resolvable:$true] %s485
      %488 = dma.vmem_to_hbm [thread:$0]  %s486, 256, %s6, [#allocation3]
    $region29: #{tpu_custom_call.1} parent=1 // pred_fallthru
      _
    // Predicated region
    $region30: #{tpu_custom_call.1} parent=1 // pred_check
      _
    $region31: #{tpu_custom_call.1} parent=1 // pred_check_branch
      %490 = sbr.rel (0) target = $region33
    $region32: #{tpu_custom_call.1} parent=1 // pred_region
      %491 = dma.done [#allocation3], 256
    $region33: #{tpu_custom_call.1} parent=1 // pred_fallthru
      _
    %492 = vsyncpa [#allocation3], 1

</llo_original>
